<compile_context>
chip_gen: v6e
topology: v6e:2x2x1
jax: 0.10.0
libtpu: 0.0.40
codegen_flags: <defaults>
</compile_context>

<pallas_src>
import functools

import jax
import jax.numpy as jnp
from jax.experimental import pallas as pl
from jax.experimental.pallas import tpu as pltpu


IN_FEATURES = 2
OUT_FEATURES = 1
NUM_NEURONS = 64
_LANE = 128


def _resnet_kernel(x_ref, wx_ref, wh_ref, misc_ref, o_ref):
    """One batch tile.

    x_ref    : (3, T)   f32   rows = [x0 ; x1 ; ones]     (batch on lanes)
    wx_ref   : (192, 3) bf16  [W1 | b1 ; W3_x | b3 ; W5_x | b5]
    wh_ref   : (256,64) bf16  [W2 ; W3_h ; W4 ; W5_h]
    misc_ref : (64, 4)  f32   col0=b2, col1=b4, col2=w6 (as column), [0,3]=b6
    o_ref    : (1, T)         lane-dense output row
    """
    cdt = wx_ref.dtype                                   # matmul operand dtype
    xt = x_ref[...].astype(cdt)                          # (3, T)
    wh = wh_ref[...]
    misc = misc_ref[...]
    b2 = misc[:, 0:1]
    b4 = misc[:, 1:2]
    w6c = misc[:, 2:3]                                   # (64, 1)
    b6 = misc[0:1, 3:4]                                  # (1, 1)

    # Fused x-side matmul; b1/b3/b5 ride the ones row of xt.
    #   rows   0: 64 -> block1_layer1 pre-activation (bias included)
    #   rows  64:128 -> x-part (+ b3) of block2_layer1
    #   rows 128:192 -> x-part (+ b5) of layer_after_block
    xw = jnp.dot(wx_ref[...], xt, preferred_element_type=jnp.float32)  # (192, T) f32

    # block1
    h = jnp.tanh(xw[0:64, :])
    h = jnp.tanh(jnp.dot(wh[0:64, :], h.astype(cdt),
                         preferred_element_type=jnp.float32) + b2)

    # block2 (cat([h, x]) handled as split matmul: W3_h @ h + W3_x @ x + b3)
    h = jnp.tanh(jnp.dot(wh[64:128, :], h.astype(cdt),
                         preferred_element_type=jnp.float32) + xw[64:128, :])
    h = jnp.tanh(jnp.dot(wh[128:192, :], h.astype(cdt),
                         preferred_element_type=jnp.float32) + b4)

    # layer_after_block (split over the second concat)
    h = jnp.tanh(jnp.dot(wh[192:256, :], h.astype(cdt),
                         preferred_element_type=jnp.float32) + xw[128:192, :])

    # layer_output (64 -> 1): VPU multiply + sublane (XLU) reduce; result is
    # already a lane-dense (1, T) row.
    out = jnp.sum(h * w6c, axis=0, keepdims=True) + b6
    o_ref[...] = out.astype(o_ref.dtype)


def init_params(key, in_features=IN_FEATURES, out_features=OUT_FEATURES,
                num_neurons=NUM_NEURONS, dtype=jnp.float32,
                matmul_dtype=jnp.bfloat16):
    """Deterministic init mimicking torch.nn.Linear default (U[-1/sqrt(fan_in), +]).

    Weights keep PyTorch's (out, in) orientation and are packed into three
    consolidated kernel inputs.  `matmul_dtype` controls the stored operand
    dtype for the MXU (bf16 default; pass jnp.float32 for full precision)."""
    def linear(k, fan_in, fan_out):
        kw, kb = jax.random.split(k)
        bound = 1.0 / float(fan_in) ** 0.5
        w = jax.random.uniform(kw, (fan_out, fan_in), dtype, -bound, bound)
        b = jax.random.uniform(kb, (fan_out,), dtype, -bound, bound)
        return w, b

    keys = jax.random.split(key, 6)
    w1, b1 = linear(keys[0], in_features, num_neurons)                 # block1_layer1
    w2, b2 = linear(keys[1], num_neurons, num_neurons)                 # block1_layer2
    w3, b3 = linear(keys[2], in_features + num_neurons, num_neurons)   # block2_layer1
    w4, b4 = linear(keys[3], num_neurons, num_neurons)                 # block2_layer2
    w5, b5 = linear(keys[4], in_features + num_neurons, num_neurons)   # layer_after_block
    w6, b6 = linear(keys[5], num_neurons, out_features)                # layer_output

    # Split the concat-facing weights: cols [0:num_neurons] hit h, the rest hit x.
    w3h, w3x = w3[:, :num_neurons], w3[:, num_neurons:]
    w5h, w5x = w5[:, :num_neurons], w5[:, num_neurons:]

    # x-side weights with b1/b3/b5 folded in as a bias column (ones row of x_aug).
    wx = jnp.concatenate([
        jnp.concatenate([w1, b1[:, None]], axis=1),
        jnp.concatenate([w3x, b3[:, None]], axis=1),
        jnp.concatenate([w5x, b5[:, None]], axis=1),
    ], axis=0).astype(matmul_dtype)                               # (192, 3)

    wh = jnp.concatenate([w2, w3h, w4, w5h], axis=0).astype(matmul_dtype)  # (256, 64)

    misc = jnp.zeros((num_neurons, 4), jnp.float32)
    misc = misc.at[:, 0].set(b2).at[:, 1].set(b4).at[:, 2].set(w6[0])
    misc = misc.at[0, 3].set(b6[0])

    raw = dict(w1=w1, b1=b1, w2=w2, b2=b2, w3=w3, b3=b3,
               w4=w4, b4=b4, w5=w5, b5=b5, w6=w6, b6=b6)
    return dict(wx=wx, wh=wh, misc=misc, raw=raw)


def _device_kind():
    try:
        return jax.devices()[0].device_kind.lower()
    except Exception:
        return ""


def _pick_tile(n, device_kind):
    # v7x has 2 TensorCores/chip: a 2-way 'parallel' grid lets megacore shard
    # the batch.  v5e/v6e have 1 TC: the grid is a serial loop, so use a single
    # tile whenever it fits (no per-step overhead, stationary weights loaded once).
    two_tc = ("v7" in device_kind) or ("tpu7" in device_kind)
    max_tile = 8192                       # VMEM-aware cap (fits v7x's 64 MiB phys)
    if two_tc and n >= 2 * _LANE:
        target = min(max_tile, (n // 2 // _LANE) * _LANE)
    else:
        target = min(max_tile, n)
    tile = max(_LANE, (target // _LANE) * _LANE)
    while n % tile:
        tile -= _LANE
    return tile


def _vmem_limit_bytes(tile):
    # ~1.4 KiB of live intermediates per batch element (xw: 192xT f32, the h
    # chain f32 + bf16 copies) + double-buffered IO.  Budget 2 KiB/element
    # + 4 MiB headroom, clamped to 48 MiB (safe even on v7x's 64 MiB VMEM).
    return int(min(48 * 2**20, max(16 * 2**20, tile * 2048 + 4 * 2**20)))


@functools.partial(jax.jit, static_argnames=("tile_n", "vmem_limit"))
def _forward_impl(x, wx, wh, misc, *, tile_n, vmem_limit):
    n = x.shape[0]
    # Single fused layout op: batch onto the lane axis + ones row for the
    # b1/b3/b5 fold (kept wrapper-side on purpose, see header comment).
    x_aug = jnp.concatenate(
        [jnp.transpose(x), jnp.ones((1, n), x.dtype)], axis=0)        # (3, N)

    def resident(arr):
        return pl.BlockSpec(arr.shape, lambda i: (0, 0))

    grid_spec = pltpu.PrefetchScalarGridSpec(
        num_scalar_prefetch=0,
        grid=(n // tile_n,),
        in_specs=[
            pl.BlockSpec((IN_FEATURES + 1, tile_n), lambda i: (0, i)),
            resident(wx),
            resident(wh),
            resident(misc),
        ],
        out_specs=pl.BlockSpec((1, tile_n), lambda i: (0, i)),
    )

    out_row = pl.pallas_call(
        _resnet_kernel,
        out_shape=jax.ShapeDtypeStruct((1, n), x.dtype),
        grid_spec=grid_spec,
        compiler_params=pltpu.CompilerParams(
            dimension_semantics=("parallel",),
            vmem_limit_bytes=vmem_limit),
    )(x_aug, wx, wh, misc)

    # (1, N) -> (N, 1) keeps element order: a free bitcast reshape.
    return out_row.reshape(n, OUT_FEATURES)


def resnet_forward(x, params, *, tile_n=None):
    """x: (N, in_features) float32, N must be a multiple of 128."""
    n, f = x.shape
    assert f == IN_FEATURES
    assert n % _LANE == 0, "batch must be a multiple of 128"
    # TODO(synk): no ragged-tail handling; callers must pad N to a multiple of 128.
    if tile_n is None:
        tile_n = _pick_tile(n, _device_kind())
    assert n % tile_n == 0 and tile_n % _LANE == 0
    return _forward_impl(x, params["wx"], params["wh"], params["misc"],
                         tile_n=tile_n, vmem_limit=_vmem_limit_bytes(tile_n))


def resnet_reference(x, raw):
    """Pure-f32 JAX reference identical to the PyTorch forward."""
    h = jnp.tanh(x @ raw["w1"].T + raw["b1"])
    h = jnp.tanh(h @ raw["w2"].T + raw["b2"])
    h = jnp.tanh(jnp.concatenate([h, x], axis=-1) @ raw["w3"].T + raw["b3"])
    h = jnp.tanh(h @ raw["w4"].T + raw["b4"])
    h = jnp.tanh(jnp.concatenate([h, x], axis=-1) @ raw["w5"].T + raw["b5"])
    return h @ raw["w6"].T + raw["b6"]                    # (N, 1)


def resnet_reference_matched(x, params):
    """Pure-JAX reference mirroring the kernel's numerics:
    bf16 matmul operands, f32 accumulation, f32 tanh/bias."""
    wx, wh, misc = params["wx"], params["wh"], params["misc"]
    cdt = wx.dtype
    n = x.shape[0]
    xa = jnp.concatenate([jnp.transpose(x), jnp.ones((1, n), x.dtype)],
                         axis=0).astype(cdt)
    xw = jnp.dot(wx, xa, preferred_element_type=jnp.float32)
    b2, b4 = misc[:, 0:1], misc[:, 1:2]
    w6c, b6 = misc[:, 2:3], misc[0, 3]
    h = jnp.tanh(xw[0:64])
    h = jnp.tanh(jnp.dot(wh[0:64], h.astype(cdt),
                         preferred_element_type=jnp.float32) + b2)
    h = jnp.tanh(jnp.dot(wh[64:128], h.astype(cdt),
                         preferred_element_type=jnp.float32) + xw[64:128])
    h = jnp.tanh(jnp.dot(wh[128:192], h.astype(cdt),
                         preferred_element_type=jnp.float32) + b4)
    h = jnp.tanh(jnp.dot(wh[192:256], h.astype(cdt),
                         preferred_element_type=jnp.float32) + xw[128:192])
    out = jnp.sum(h * w6c, axis=0, keepdims=True) + b6
    return jnp.transpose(out)                             # (N, 1)


if __name__ == "__main__":
    key = jax.random.PRNGKey(0)
    k_params, k_x = jax.random.split(key)

    params = init_params(k_params)

    N = 256  # small batch of (x, t) collocation points (multiple of 128)
    x = jax.random.normal(k_x, (N, IN_FEATURES), jnp.float32)

    out = jax.block_until_ready(resnet_forward(x, params))
    assert out.shape == (N, OUT_FEATURES), out.shape

    # Tight check against a reference with the kernel's exact numerics
    # (bf16 MXU operands, f32 accumulation).
    ref_matched = resnet_reference_matched(x, params)
    err_m = float(jnp.max(jnp.abs(out - ref_matched)))
    assert jnp.allclose(out, ref_matched, atol=1e-2, rtol=1e-2), err_m

    # Looser check against the full-f32 PyTorch-equivalent forward: bf16 matmul
    # operands trade ~1e-3 absolute accuracy for ~3x fewer MXU passes.
    ref_f32 = resnet_reference(x, params["raw"])
    err_f = float(jnp.max(jnp.abs(out - ref_f32)))
    assert jnp.allclose(out, ref_f32, atol=3e-2, rtol=3e-2), err_f

    print("KERNEL_OK")
</pallas_src>

<mosaic_0001>
module attributes {stable_mosaic.version = 11 : i64} {
  func.func @_resnet_kernel(%arg0: i32, %arg1: memref<3x256xf32, #tpu.memory_space<vmem>>, %arg2: memref<192x3xbf16, #tpu.memory_space<vmem>>, %arg3: memref<256x64xbf16, #tpu.memory_space<vmem>>, %arg4: memref<64x4xf32, #tpu.memory_space<vmem>>, %arg5: memref<1x256xf32, #tpu.memory_space<vmem>>) attributes {dimension_semantics = [#tpu.dimension_semantics<parallel>], iteration_bounds = array<i64: 1>, scalar_prefetch = 0 : i64, scratch_operands = 0 : i64, tpu.core_type = #tpu.core_type<tc>, window_params = [{transform_indices = @transform_0, window_bounds = array<i64: 3, 256>}, {pipeline_mode = #tpu.pipeline_mode<synchronous>, transform_indices = @transform_1, window_bounds = array<i64: 192, 3>}, {pipeline_mode = #tpu.pipeline_mode<synchronous>, transform_indices = @transform_2, window_bounds = array<i64: 256, 64>}, {pipeline_mode = #tpu.pipeline_mode<synchronous>, transform_indices = @transform_3, window_bounds = array<i64: 64, 4>}, {transform_indices = @transform_4, window_bounds = array<i64: 1, 256>}]} {
    %c0 = arith.constant 0 : index
    %c0_0 = arith.constant 0 : index
    %0 = vector.load %arg1[%c0, %c0_0] : memref<3x256xf32, #tpu.memory_space<vmem>>, vector<3x256xf32>
    %1 = arith.truncf %0 : vector<3x256xf32> to vector<3x256xbf16>
    %c0_1 = arith.constant 0 : index
    %c0_2 = arith.constant 0 : index
    %2 = vector.load %arg3[%c0_1, %c0_2] : memref<256x64xbf16, #tpu.memory_space<vmem>>, vector<256x64xbf16>
    %c0_3 = arith.constant 0 : index
    %c0_4 = arith.constant 0 : index
    %3 = vector.load %arg4[%c0_3, %c0_4] : memref<64x4xf32, #tpu.memory_space<vmem>>, vector<64x4xf32>
    %4 = vector.extract_strided_slice %3 {offsets = [0, 0], sizes = [64, 1], strides = [1, 1]} : vector<64x4xf32> to vector<64x1xf32>
    %5 = vector.extract_strided_slice %3 {offsets = [0, 1], sizes = [64, 1], strides = [1, 1]} : vector<64x4xf32> to vector<64x1xf32>
    %6 = vector.extract_strided_slice %3 {offsets = [0, 2], sizes = [64, 1], strides = [1, 1]} : vector<64x4xf32> to vector<64x1xf32>
    %7 = vector.extract_strided_slice %3 {offsets = [0, 3], sizes = [1, 1], strides = [1, 1]} : vector<64x4xf32> to vector<1x1xf32>
    %c0_5 = arith.constant 0 : index
    %c0_6 = arith.constant 0 : index
    %8 = vector.load %arg2[%c0_5, %c0_6] : memref<192x3xbf16, #tpu.memory_space<vmem>>, vector<192x3xbf16>
    %cst = arith.constant dense<0.000000e+00> : vector<192x256xf32>
    %9 = tpu.matmul %8, %1, %cst {dimension_numbers = #tpu.dot_dimension_numbers<[1], [0], [0], [1], [0, 0, 1, 1], [], []>} : vector<192x3xbf16>, vector<3x256xbf16>, vector<192x256xf32> -> vector<192x256xf32>
    %10 = vector.extract_strided_slice %9 {offsets = [0, 0], sizes = [64, 256], strides = [1, 1]} : vector<192x256xf32> to vector<64x256xf32>
    %11 = math.tanh %10 : vector<64x256xf32>
    %12 = vector.extract_strided_slice %2 {offsets = [0, 0], sizes = [64, 64], strides = [1, 1]} : vector<256x64xbf16> to vector<64x64xbf16>
    %13 = arith.truncf %11 : vector<64x256xf32> to vector<64x256xbf16>
    %cst_7 = arith.constant dense<0.000000e+00> : vector<64x256xf32>
    %14 = tpu.matmul %12, %13, %cst_7 {dimension_numbers = #tpu.dot_dimension_numbers<[1], [0], [0], [1], [0, 0, 1, 1], [], []>} : vector<64x64xbf16>, vector<64x256xbf16>, vector<64x256xf32> -> vector<64x256xf32>
    %15 = vector.broadcast %4 : vector<64x1xf32> to vector<64x256xf32>
    %16 = arith.addf %14, %15 : vector<64x256xf32>
    %17 = math.tanh %16 : vector<64x256xf32>
    %18 = vector.extract_strided_slice %2 {offsets = [64, 0], sizes = [64, 64], strides = [1, 1]} : vector<256x64xbf16> to vector<64x64xbf16>
    %19 = arith.truncf %17 : vector<64x256xf32> to vector<64x256xbf16>
    %cst_8 = arith.constant dense<0.000000e+00> : vector<64x256xf32>
    %20 = tpu.matmul %18, %19, %cst_8 {dimension_numbers = #tpu.dot_dimension_numbers<[1], [0], [0], [1], [0, 0, 1, 1], [], []>} : vector<64x64xbf16>, vector<64x256xbf16>, vector<64x256xf32> -> vector<64x256xf32>
    %21 = vector.extract_strided_slice %9 {offsets = [64, 0], sizes = [64, 256], strides = [1, 1]} : vector<192x256xf32> to vector<64x256xf32>
    %22 = arith.addf %20, %21 : vector<64x256xf32>
    %23 = math.tanh %22 : vector<64x256xf32>
    %24 = vector.extract_strided_slice %2 {offsets = [128, 0], sizes = [64, 64], strides = [1, 1]} : vector<256x64xbf16> to vector<64x64xbf16>
    %25 = arith.truncf %23 : vector<64x256xf32> to vector<64x256xbf16>
    %cst_9 = arith.constant dense<0.000000e+00> : vector<64x256xf32>
    %26 = tpu.matmul %24, %25, %cst_9 {dimension_numbers = #tpu.dot_dimension_numbers<[1], [0], [0], [1], [0, 0, 1, 1], [], []>} : vector<64x64xbf16>, vector<64x256xbf16>, vector<64x256xf32> -> vector<64x256xf32>
    %27 = vector.broadcast %5 : vector<64x1xf32> to vector<64x256xf32>
    %28 = arith.addf %26, %27 : vector<64x256xf32>
    %29 = math.tanh %28 : vector<64x256xf32>
    %30 = vector.extract_strided_slice %2 {offsets = [192, 0], sizes = [64, 64], strides = [1, 1]} : vector<256x64xbf16> to vector<64x64xbf16>
    %31 = arith.truncf %29 : vector<64x256xf32> to vector<64x256xbf16>
    %cst_10 = arith.constant dense<0.000000e+00> : vector<64x256xf32>
    %32 = tpu.matmul %30, %31, %cst_10 {dimension_numbers = #tpu.dot_dimension_numbers<[1], [0], [0], [1], [0, 0, 1, 1], [], []>} : vector<64x64xbf16>, vector<64x256xbf16>, vector<64x256xf32> -> vector<64x256xf32>
    %33 = vector.extract_strided_slice %9 {offsets = [128, 0], sizes = [64, 256], strides = [1, 1]} : vector<192x256xf32> to vector<64x256xf32>
    %34 = arith.addf %32, %33 : vector<64x256xf32>
    %35 = math.tanh %34 : vector<64x256xf32>
    %36 = vector.broadcast %6 : vector<64x1xf32> to vector<64x256xf32>
    %37 = arith.mulf %35, %36 : vector<64x256xf32>
    %cst_11 = arith.constant dense<0.000000e+00> : vector<256xf32>
    %38 = vector.multi_reduction <add>, %37, %cst_11 [0] : vector<64x256xf32> to vector<256xf32>
    %39 = vector.shape_cast %38 : vector<256xf32> to vector<1x256xf32>
    %40 = vector.broadcast %7 : vector<1x1xf32> to vector<1x256xf32>
    %41 = arith.addf %39, %40 : vector<1x256xf32>
    %c0_12 = arith.constant 0 : index
    %c0_13 = arith.constant 0 : index
    %42 = vector.load %arg5[%c0_12, %c0_13] : memref<1x256xf32, #tpu.memory_space<vmem>>, vector<1x256xf32>
    tpu.vector_store %arg5[%c0_12, %c0_13], %41 {strides = array<i32>} : memref<1x256xf32, #tpu.memory_space<vmem>>, vector<1x256xf32>,
    return
  }
  func.func @transform_0(%arg0: i32) -> (i32, i32) {
    %c0_i32 = arith.constant 0 : i32
    %c0_i32_0 = arith.constant 0 : i32
    return %c0_i32, %arg0 : i32, i32
  }
  func.func @transform_1(%arg0: i32) -> (i32, i32) {
    %c0_i32 = arith.constant 0 : i32
    %c0_i32_0 = arith.constant 0 : i32
    %c0_i32_1 = arith.constant 0 : i32
    return %c0_i32, %c0_i32_0 : i32, i32
  }
  func.func @transform_2(%arg0: i32) -> (i32, i32) {
    %c0_i32 = arith.constant 0 : i32
    %c0_i32_0 = arith.constant 0 : i32
    %c0_i32_1 = arith.constant 0 : i32
    return %c0_i32, %c0_i32_0 : i32, i32
  }
  func.func @transform_3(%arg0: i32) -> (i32, i32) {
    %c0_i32 = arith.constant 0 : i32
    %c0_i32_0 = arith.constant 0 : i32
    %c0_i32_1 = arith.constant 0 : i32
    return %c0_i32, %c0_i32_0 : i32, i32
  }
  func.func @transform_4(%arg0: i32) -> (i32, i32) {
    %c0_i32 = arith.constant 0 : i32
    %c0_i32_0 = arith.constant 0 : i32
    return %c0_i32, %arg0 : i32, i32
  }
}

</mosaic_0001>

<llo_original>
// kernel: _forward_impl.1
$region0: #{_forward_impl.1}
  #allocation0 [shape = 'u32[]', space=smem, size = 0x4, offset = 0x4, fixed_abs, tag = 'smem constant byte address 0x4 - core index']
  #allocation1 [shape = 'u32[144,128]{1,0:T(1,128)}', space=vmem, size = 0x12000, scoped, tag = 'internal scratch']
  %s0 = inlined_call_operand.vmem [shape: f32[3,256], index: 0, kind: input, shape index: {}]
  %s1 = inlined_call_operand.vmem [shape: bf16[192,3], index: 1, kind: input, shape index: {}]
  %s2 = inlined_call_operand.vmem [shape: bf16[256,64], index: 2, kind: input, shape index: {}]
  %s3 = inlined_call_operand.vmem [shape: f32[64,4], index: 3, kind: input, shape index: {}]
  %s4 = inlined_call_operand.hbm [shape: f32[1,256], index: 4, kind: output, shape index: {}]
  %s5 = sld [smem:[#allocation0]]
  $region26: #{_forward_impl.1} parent=0
    _
  %s7 = ssub.s32 1, %s5
  %s8 = scalar_select 0, %s7, %s5
  $region1: #{_forward_impl.1} parent=0
    #allocation2 [shape = 'u8[1024]{0}', space=vmem, size = 0x400, scoped, tag = 'output window, operand 0, single buffered']
    #allocation3 [shape = 's32[1]{0}', space=sflag, size = 0x4, scoped, tag = 'scoped memory for _forward_impl.1']
    %9 = vsyncpa [#allocation3], 0
    // Predicated region
    $region2: #{_forward_impl.1} parent=1 // pred_check
      _
    $region3: #{_forward_impl.1} parent=1 // pred_check_branch
      %11 = sbr.rel (0) target = $region5
    $region4: #{_forward_impl.1} parent=1 // pred_region
      _
    $region5: #{_forward_impl.1} parent=1 // pred_fallthru
      _
    // Predicated region
    $region6: #{_forward_impl.1} parent=1 // pred_check
      _
    $region7: #{_forward_impl.1} parent=1 // pred_check_branch
      %13 = sbr.rel (0) target = $region9
    $region8: #{_forward_impl.1} parent=1 // pred_region
      _
    $region9: #{_forward_impl.1} parent=1 // pred_fallthru
      _
    // Predicated region
    $region10: #{_forward_impl.1} parent=1 // pred_check
      _
    $region11: #{_forward_impl.1} parent=1 // pred_check_branch
      %15 = sbr.rel (0) target = $region13
    $region12: #{_forward_impl.1} parent=1 // pred_region
      _
    $region13: #{_forward_impl.1} parent=1 // pred_fallthru
      _
    // Predicated region
    $region14: #{_forward_impl.1} parent=1 // pred_check
      _
    $region15: #{_forward_impl.1} parent=1 // pred_check_branch
      %17 = sbr.rel (0) target = $region17
    $region16: #{_forward_impl.1} parent=1 // pred_region
      _
    $region17: #{_forward_impl.1} parent=1 // pred_fallthru
      _
    %v19 = vld [vmem:[%s0] sm:$0x77]
    %v21 = vcombine.high %v19, %v19
    %v23 = vpack.c.bf16 %v19, %v19
    %v24 = vpack.c.bf16 %v21, %v21
    %v25 = vld [vmem:[%s2] sm:$0xf]
    %v26 = vld [vmem:[%s2 + $0x4] sm:$0xf]
    %v27 = vld [vmem:[%s2 + $0x8] sm:$0xf]
    %v28 = vld [vmem:[%s2 + $0xc] sm:$0xf]
    %v29 = vld [vmem:[%s2 + $0x10] sm:$0xf]
    %v30 = vld [vmem:[%s2 + $0x14] sm:$0xf]
    %v31 = vld [vmem:[%s2 + $0x18] sm:$0xf]
    %v32 = vld [vmem:[%s2 + $0x1c] sm:$0xf]
    %v33 = vld [vmem:[%s2 + $0x20] sm:$0xf]
    %v34 = vld [vmem:[%s2 + $0x24] sm:$0xf]
    %v35 = vld [vmem:[%s2 + $0x28] sm:$0xf]
    %v36 = vld [vmem:[%s2 + $0x2c] sm:$0xf]
    %v37 = vld [vmem:[%s2 + $0x30] sm:$0xf]
    %v38 = vld [vmem:[%s2 + $0x34] sm:$0xf]
    %v39 = vld [vmem:[%s2 + $0x38] sm:$0xf]
    %v40 = vld [vmem:[%s2 + $0x3c] sm:$0xf]
    %v41 = vld [vmem:[%s2 + $0x40] sm:$0xf]
    %v42 = vld [vmem:[%s2 + $0x44] sm:$0xf]
    %v43 = vld [vmem:[%s2 + $0x48] sm:$0xf]
    %v44 = vld [vmem:[%s2 + $0x4c] sm:$0xf]
    %v45 = vld [vmem:[%s2 + $0x50] sm:$0xf]
    %v46 = vld [vmem:[%s2 + $0x54] sm:$0xf]
    %v47 = vld [vmem:[%s2 + $0x58] sm:$0xf]
    %v48 = vld [vmem:[%s2 + $0x5c] sm:$0xf]
    %v49 = vld [vmem:[%s2 + $0x60] sm:$0xf]
    %v50 = vld [vmem:[%s2 + $0x64] sm:$0xf]
    %v51 = vld [vmem:[%s2 + $0x68] sm:$0xf]
    %v52 = vld [vmem:[%s2 + $0x6c] sm:$0xf]
    %v53 = vld [vmem:[%s2 + $0x70] sm:$0xf]
    %v54 = vld [vmem:[%s2 + $0x74] sm:$0xf]
    %v55 = vld [vmem:[%s2 + $0x78] sm:$0xf]
    %v56 = vld [vmem:[%s2 + $0x7c] sm:$0xf]
    %v57 = vld [vmem:[%s3] sm:$0xff]
    %v58 = vld [vmem:[%s3 + $0x8] sm:$0xff]
    %v59 = vld [vmem:[%s3 + $0x10] sm:$0xff]
    %v60 = vld [vmem:[%s3 + $0x18] sm:$0xff]
    %v61 = vld [vmem:[%s3 + $0x20] sm:$0xff]
    %v62 = vld [vmem:[%s3 + $0x28] sm:$0xff]
    %v63 = vld [vmem:[%s3 + $0x30] sm:$0xff]
    %v64 = vld [vmem:[%s3 + $0x38] sm:$0xff]
    %v65 = vld [vmem:[%s1] sm:$0xf]
    %v66 = vld [vmem:[%s1 + $0x4] sm:$0xf]
    %v67 = vld [vmem:[%s1 + $0x8] sm:$0xf]
    %v68 = vld [vmem:[%s1 + $0xc] sm:$0xf]
    %v69 = vld [vmem:[%s1 + $0x10] sm:$0xf]
    %v70 = vld [vmem:[%s1 + $0x14] sm:$0xf]
    %v71 = vld [vmem:[%s1 + $0x18] sm:$0xf]
    %v72 = vld [vmem:[%s1 + $0x1c] sm:$0xf]
    %v73 = vld [vmem:[%s1 + $0x20] sm:$0xf]
    %v74 = vld [vmem:[%s1 + $0x24] sm:$0xf]
    %v75 = vld [vmem:[%s1 + $0x28] sm:$0xf]
    %v76 = vld [vmem:[%s1 + $0x2c] sm:$0xf]
    %v77 = vld [vmem:[%s1 + $0x30] sm:$0xf]
    %v78 = vld [vmem:[%s1 + $0x34] sm:$0xf]
    %v79 = vld [vmem:[%s1 + $0x38] sm:$0xf]
    %v80 = vld [vmem:[%s1 + $0x3c] sm:$0xf]
    %v81 = vld [vmem:[%s1 + $0x40] sm:$0xf]
    %v82 = vld [vmem:[%s1 + $0x44] sm:$0xf]
    %v83 = vld [vmem:[%s1 + $0x48] sm:$0xf]
    %v84 = vld [vmem:[%s1 + $0x4c] sm:$0xf]
    %v85 = vld [vmem:[%s1 + $0x50] sm:$0xf]
    %v86 = vld [vmem:[%s1 + $0x54] sm:$0xf]
    %v87 = vld [vmem:[%s1 + $0x58] sm:$0xf]
    %v88 = vld [vmem:[%s1 + $0x5c] sm:$0xf]
    %v113 = vunpack.c.l.b16 %v65
    %v114 = vunpack.c.l.b16 %v66
    %v115 = vunpack.c.l.b16 %v67
    %v116 = vunpack.c.l.b16 %v68
    %v117 = vunpack.c.l.b16 %v69
    %v118 = vunpack.c.l.b16 %v70
    %v119 = vunpack.c.l.b16 %v71
    %v120 = vunpack.c.l.b16 %v72
    %v121 = vunpack.c.l.b16 %v73
    %v122 = vunpack.c.l.b16 %v74
    %v123 = vunpack.c.l.b16 %v75
    %v124 = vunpack.c.l.b16 %v76
    %v125 = vunpack.c.l.b16 %v77
    %v126 = vunpack.c.l.b16 %v78
    %v127 = vunpack.c.l.b16 %v79
    %v128 = vunpack.c.l.b16 %v80
    %v129 = vunpack.c.l.b16 %v81
    %v130 = vunpack.c.l.b16 %v82
    %v131 = vunpack.c.l.b16 %v83
    %v132 = vunpack.c.l.b16 %v84
    %v133 = vunpack.c.l.b16 %v85
    %v134 = vunpack.c.l.b16 %v86
    %v135 = vunpack.c.l.b16 %v87
    %v136 = vunpack.c.l.b16 %v88
    %v137 = vpack.c.b16 %v114, %v113
    %v138 = vpack.c.b16 %v116, %v115
    %v139 = vpack.c.b16 %v118, %v117
    %v140 = vpack.c.b16 %v120, %v119
    %v141 = vpack.c.b16 %v122, %v121
    %v142 = vpack.c.b16 %v124, %v123
    %v143 = vpack.c.b16 %v126, %v125
    %v144 = vpack.c.b16 %v128, %v127
    %v145 = vpack.c.b16 %v130, %v129
    %v146 = vpack.c.b16 %v132, %v131
    %v147 = vpack.c.b16 %v134, %v133
    %v148 = vpack.c.b16 %v136, %v135
    %vm149 = vcmask 23552
    %v151 = vsel %vm149, %v137, 0
    %v154 = vsel %vm149, %v138, 0
    %v157 = vsel %vm149, %v139, 0
    %v160 = vsel %vm149, %v140, 0
    %v163 = vsel %vm149, %v141, 0
    %v166 = vsel %vm149, %v142, 0
    %v169 = vsel %vm149, %v143, 0
    %v172 = vsel %vm149, %v144, 0
    %v175 = vsel %vm149, %v145, 0
    %v178 = vsel %vm149, %v146, 0
    %v181 = vsel %vm149, %v147, 0
    %v184 = vsel %vm149, %v148, 0
    %vm186 = vcmask 1040384
    %vm187 = vcmask 1041408
    %v188 = vsel %vm186, 4294967295, 65535
    %v189 = vsel %vm187, %v188, 0
    %v191 = vand.u32 %v23, %v189
    %v194 = vand.u32 %v24, %v189
    %196 = vmatprep.subr.bf16.mxu0 0
    %197 = vmatpush1.bf16.msra.mxu0 0
    %198 = vmatprep.subr.bf16.mxu0 0
    %199 = vmatpush1.bf16.msra.mxu0 0
    %200 = vmatprep.subr.bf16.mxu0 0
    %201 = vmatpush1.bf16.msra.mxu0 0
    %202 = vmatprep.subr.bf16.mxu0 0
    %203 = vmatpush1.bf16.msra.mxu0 0
    %204 = vmatprep.subr.bf16.mxu0 0
    %205 = vmatpush1.bf16.msra.mxu0 0
    %206 = vmatprep.subr.bf16.mxu0 0
    %207 = vmatpush1.bf16.msra.mxu0 0
    %208 = vmatprep.subr.bf16.mxu0 0
    %209 = vmatpush1.bf16.msra.mxu0 0
    %210 = vmatprep.subr.bf16.mxu0 %v194
    %211 = vmatpush1.bf16.msra.mxu0 %v191
    %212 = vmatprep.subr.bf16.mxu0 0
    %213 = vmatpush2.bf16.msra.mxu0 0
    %214 = vmatprep.subr.bf16.mxu0 0
    %215 = vmatpush2.bf16.msra.mxu0 0
    %216 = vmatprep.subr.bf16.mxu0 0
    %217 = vmatpush2.bf16.msra.mxu0 0
    %218 = vmatprep.subr.bf16.mxu0 0
    %219 = vmatpush2.bf16.msra.mxu0 0
    %220 = vmatprep.subr.bf16.mxu0 0
    %221 = vmatpush2.bf16.msra.mxu0 0
    %222 = vmatprep.subr.bf16.mxu0 0
    %223 = vmatpush2.bf16.msra.mxu0 0
    %224 = vmatprep.subr.bf16.mxu0 0
    %225 = vmatpush2.bf16.msra.mxu0 0
    %226 = vmatprep.subr.bf16.mxu0 0
    %227 = vmatpush2.bf16.msra.mxu0 0
    %228 = vmatprep.mubr.bf16.mxu0 0
    %229 = vmatmul.mubr.bf16.gmra.mxu0 %v151
    %v230 = vpop.f32.mrf.mxu0
    %v231 = vadd.f32 0.0, %v230
    %v232 = vpop.f32.mrf.mxu0
    %v233 = vadd.f32 0.0, %v232
    %v234 = vpop.f32.mrf.mxu0
    %v235 = vadd.f32 0.0, %v234
    %v236 = vpop.f32.mrf.mxu0
    %v237 = vadd.f32 0.0, %v236
    %238 = vmatprep.mubr.bf16.mxu0 0
    %239 = vmatmul.mubr.bf16.gmra.mxu0 %v154
    %v240 = vpop.f32.mrf.mxu0
    %v241 = vadd.f32 0.0, %v240
    %v242 = vpop.f32.mrf.mxu0
    %v243 = vadd.f32 0.0, %v242
    %v244 = vpop.f32.mrf.mxu0
    %v245 = vadd.f32 0.0, %v244
    %v246 = vpop.f32.mrf.mxu0
    %v247 = vadd.f32 0.0, %v246
    %248 = vmatprep.mubr.bf16.mxu0 0
    %249 = vmatmul.mubr.bf16.gmra.mxu0 %v157
    %v250 = vpop.f32.mrf.mxu0
    %v251 = vadd.f32 0.0, %v250
    %v252 = vpop.f32.mrf.mxu0
    %v253 = vadd.f32 0.0, %v252
    %v254 = vpop.f32.mrf.mxu0
    %v255 = vadd.f32 0.0, %v254
    %v256 = vpop.f32.mrf.mxu0
    %v257 = vadd.f32 0.0, %v256
    %258 = vmatprep.mubr.bf16.mxu0 0
    %259 = vmatmul.mubr.bf16.gmra.mxu0 %v160
    %v260 = vpop.f32.mrf.mxu0
    %v261 = vadd.f32 0.0, %v260
    %v262 = vpop.f32.mrf.mxu0
    %v263 = vadd.f32 0.0, %v262
    %v264 = vpop.f32.mrf.mxu0
    %v265 = vadd.f32 0.0, %v264
    %v266 = vpop.f32.mrf.mxu0
    %v267 = vadd.f32 0.0, %v266
    %268 = vmatprep.mubr.bf16.mxu0 0
    %269 = vmatmul.mubr.bf16.gmra.mxu0 %v163
    %v270 = vpop.f32.mrf.mxu0
    %v271 = vadd.f32 0.0, %v270
    %v272 = vpop.f32.mrf.mxu0
    %v273 = vadd.f32 0.0, %v272
    %v274 = vpop.f32.mrf.mxu0
    %v275 = vadd.f32 0.0, %v274
    %v276 = vpop.f32.mrf.mxu0
    %v277 = vadd.f32 0.0, %v276
    %278 = vmatprep.mubr.bf16.mxu0 0
    %279 = vmatmul.mubr.bf16.gmra.mxu0 %v166
    %v280 = vpop.f32.mrf.mxu0
    %v281 = vadd.f32 0.0, %v280
    %v282 = vpop.f32.mrf.mxu0
    %v283 = vadd.f32 0.0, %v282
    %v284 = vpop.f32.mrf.mxu0
    %v285 = vadd.f32 0.0, %v284
    %v286 = vpop.f32.mrf.mxu0
    %v287 = vadd.f32 0.0, %v286
    %288 = vmatprep.mubr.bf16.mxu0 0
    %289 = vmatmul.mubr.bf16.gmra.mxu0 %v169
    %v290 = vpop.f32.mrf.mxu0
    %v291 = vadd.f32 0.0, %v290
    %v292 = vpop.f32.mrf.mxu0
    %v293 = vadd.f32 0.0, %v292
    %v294 = vpop.f32.mrf.mxu0
    %v295 = vadd.f32 0.0, %v294
    %v296 = vpop.f32.mrf.mxu0
    %v297 = vadd.f32 0.0, %v296
    %298 = vmatprep.mubr.bf16.mxu0 0
    %299 = vmatmul.mubr.bf16.gmra.mxu0 %v172
    %v300 = vpop.f32.mrf.mxu0
    %v301 = vadd.f32 0.0, %v300
    %v302 = vpop.f32.mrf.mxu0
    %v303 = vadd.f32 0.0, %v302
    %v304 = vpop.f32.mrf.mxu0
    %v305 = vadd.f32 0.0, %v304
    %v306 = vpop.f32.mrf.mxu0
    %v307 = vadd.f32 0.0, %v306
    %308 = vmatprep.mubr.bf16.mxu0 0
    %309 = vmatmul.mubr.bf16.gmra.mxu0 %v175
    %v310 = vpop.f32.mrf.mxu0
    %v311 = vadd.f32 0.0, %v310
    %v312 = vpop.f32.mrf.mxu0
    %v313 = vadd.f32 0.0, %v312
    %v314 = vpop.f32.mrf.mxu0
    %v315 = vadd.f32 0.0, %v314
    %v316 = vpop.f32.mrf.mxu0
    %v317 = vadd.f32 0.0, %v316
    %318 = vmatprep.mubr.bf16.mxu0 0
    %319 = vmatmul.mubr.bf16.gmra.mxu0 %v178
    %v320 = vpop.f32.mrf.mxu0
    %v321 = vadd.f32 0.0, %v320
    %v322 = vpop.f32.mrf.mxu0
    %v323 = vadd.f32 0.0, %v322
    %v324 = vpop.f32.mrf.mxu0
    %v325 = vadd.f32 0.0, %v324
    %v326 = vpop.f32.mrf.mxu0
    %v327 = vadd.f32 0.0, %v326
    %328 = vmatprep.mubr.bf16.mxu0 0
    %329 = vmatmul.mubr.bf16.gmra.mxu0 %v181
    %v330 = vpop.f32.mrf.mxu0
    %v331 = vadd.f32 0.0, %v330
    %v332 = vpop.f32.mrf.mxu0
    %v333 = vadd.f32 0.0, %v332
    %v334 = vpop.f32.mrf.mxu0
    %v335 = vadd.f32 0.0, %v334
    %v336 = vpop.f32.mrf.mxu0
    %v337 = vadd.f32 0.0, %v336
    %338 = vmatprep.mubr.bf16.mxu0 0
    %339 = vmatmul.mubr.bf16.gmra.mxu0 %v184
    %v340 = vpop.f32.mrf.mxu0
    %v341 = vadd.f32 0.0, %v340
    %v342 = vpop.f32.mrf.mxu0
    %v343 = vadd.f32 0.0, %v342
    %v344 = vpop.f32.mrf.mxu0
    %v345 = vadd.f32 0.0, %v344
    %v346 = vpop.f32.mrf.mxu0
    %v347 = vadd.f32 0.0, %v346
    %348 = vdwg.mxu0
    %v349 = vtanh.pop %v231
    %v350 = vtanh.pop %v233
    %v351 = vtanh.pop %v235
    %v352 = vtanh.pop %v237
    %v353 = vtanh.pop %v241
    %v354 = vtanh.pop %v243
    %v355 = vtanh.pop %v245
    %v356 = vtanh.pop %v247
    %v357 = vtanh.pop %v251
    %v358 = vtanh.pop %v253
    %v359 = vtanh.pop %v255
    %v360 = vtanh.pop %v257
    %v361 = vtanh.pop %v261
    %v362 = vtanh.pop %v263
    %v363 = vtanh.pop %v265
    %v364 = vtanh.pop %v267
    %v365 = vpack.c.bf16 %v351, %v349
    %v366 = vpack.c.bf16 %v352, %v350
    %v367 = vpack.c.bf16 %v355, %v353
    %v368 = vpack.c.bf16 %v356, %v354
    %v369 = vpack.c.bf16 %v359, %v357
    %v370 = vpack.c.bf16 %v360, %v358
    %v371 = vpack.c.bf16 %v363, %v361
    %v372 = vpack.c.bf16 %v364, %v362
    %374 = vset.pattern.permute.xlu0 0
    %375 = vperm.xlu0 %374, %v57
    %v376 = vpop.permute.xlu0 %375
    %379 = vset.pattern.permute.xlu0 0
    %380 = vperm.xlu0 %379, %v58
    %v381 = vpop.permute.xlu0 %380
    %384 = vset.pattern.permute.xlu0 0
    %385 = vperm.xlu0 %384, %v59
    %v386 = vpop.permute.xlu0 %385
    %389 = vset.pattern.permute.xlu0 0
    %390 = vperm.xlu0 %389, %v60
    %v391 = vpop.permute.xlu0 %390
    %394 = vset.pattern.permute.xlu0 0
    %395 = vperm.xlu0 %394, %v61
    %v396 = vpop.permute.xlu0 %395
    %399 = vset.pattern.permute.xlu0 0
    %400 = vperm.xlu0 %399, %v62
    %v401 = vpop.permute.xlu0 %400
    %404 = vset.pattern.permute.xlu0 0
    %405 = vperm.xlu0 %404, %v63
    %v406 = vpop.permute.xlu0 %405
    %409 = vset.pattern.permute.xlu0 0
    %410 = vperm.xlu0 %409, %v64
    %v411 = vpop.permute.xlu0 %410
    %v421 = vunpack.c.l.b16 %v25
    %v422 = vunpack.c.l.b16 %v26
    %v423 = vunpack.c.l.b16 %v27
    %v424 = vunpack.c.l.b16 %v28
    %v425 = vunpack.c.l.b16 %v29
    %v426 = vunpack.c.l.b16 %v30
    %v427 = vunpack.c.l.b16 %v31
    %v428 = vunpack.c.l.b16 %v32
    %v429 = vpack.c.b16 %v422, %v421
    %v430 = vpack.c.b16 %v424, %v423
    %v431 = vpack.c.b16 %v426, %v425
    %v432 = vpack.c.b16 %v428, %v427
    %vm433 = vcmask 523264
    %v435 = vsel %vm433, %v429, 0
    %v438 = vsel %vm433, %v430, 0
    %v441 = vsel %vm433, %v431, 0
    %v444 = vsel %vm433, %v432, 0
    %446 = vmatprep.subr.bf16.mxu0 0
    %447 = vmatpush1.bf16.msra.mxu0 0
    %448 = vmatprep.subr.bf16.mxu0 0
    %449 = vmatpush1.bf16.msra.mxu0 0
    %450 = vmatprep.subr.bf16.mxu0 0
    %451 = vmatpush1.bf16.msra.mxu0 0
    %452 = vmatprep.subr.bf16.mxu0 0
    %453 = vmatpush1.bf16.msra.mxu0 0
    %454 = vmatprep.subr.bf16.mxu0 %v372
    %455 = vmatpush1.bf16.msra.mxu0 %v371
    %456 = vmatprep.subr.bf16.mxu0 %v370
    %457 = vmatpush1.bf16.msra.mxu0 %v369
    %458 = vmatprep.subr.bf16.mxu0 %v368
    %459 = vmatpush1.bf16.msra.mxu0 %v367
    %460 = vmatprep.subr.bf16.mxu0 %v366
    %461 = vmatpush1.bf16.msra.mxu0 %v365
    %462 = vmatprep.subr.bf16.mxu0 0
    %463 = vmatpush2.bf16.msra.mxu0 0
    %464 = vmatprep.subr.bf16.mxu0 0
    %465 = vmatpush2.bf16.msra.mxu0 0
    %466 = vmatprep.subr.bf16.mxu0 0
    %467 = vmatpush2.bf16.msra.mxu0 0
    %468 = vmatprep.subr.bf16.mxu0 0
    %469 = vmatpush2.bf16.msra.mxu0 0
    %470 = vmatprep.subr.bf16.mxu0 0
    %471 = vmatpush2.bf16.msra.mxu0 0
    %472 = vmatprep.subr.bf16.mxu0 0
    %473 = vmatpush2.bf16.msra.mxu0 0
    %474 = vmatprep.subr.bf16.mxu0 0
    %475 = vmatpush2.bf16.msra.mxu0 0
    %476 = vmatprep.subr.bf16.mxu0 0
    %477 = vmatpush2.bf16.msra.mxu0 0
    %478 = vmatprep.mubr.bf16.mxu0 0
    %479 = vmatmul.mubr.bf16.gmra.mxu0 %v435
    %v480 = vpop.f32.mrf.mxu0
    %v481 = vadd.f32 %v376, %v480
    %v482 = vpop.f32.mrf.mxu0
    %v483 = vadd.f32 %v376, %v482
    %v484 = vpop.f32.mrf.mxu0
    %v485 = vadd.f32 %v381, %v484
    %v486 = vpop.f32.mrf.mxu0
    %v487 = vadd.f32 %v381, %v486
    %488 = vmatprep.mubr.bf16.mxu0 0
    %489 = vmatmul.mubr.bf16.gmra.mxu0 %v438
    %v490 = vpop.f32.mrf.mxu0
    %v491 = vadd.f32 %v386, %v490
    %v492 = vpop.f32.mrf.mxu0
    %v493 = vadd.f32 %v386, %v492
    %v494 = vpop.f32.mrf.mxu0
    %v495 = vadd.f32 %v391, %v494
    %v496 = vpop.f32.mrf.mxu0
    %v497 = vadd.f32 %v391, %v496
    %498 = vmatprep.mubr.bf16.mxu0 0
    %499 = vmatmul.mubr.bf16.gmra.mxu0 %v441
    %v500 = vpop.f32.mrf.mxu0
    %v501 = vadd.f32 %v396, %v500
    %v502 = vpop.f32.mrf.mxu0
    %v503 = vadd.f32 %v396, %v502
    %v504 = vpop.f32.mrf.mxu0
    %v505 = vadd.f32 %v401, %v504
    %v506 = vpop.f32.mrf.mxu0
    %v507 = vadd.f32 %v401, %v506
    %508 = vmatprep.mubr.bf16.mxu0 0
    %509 = vmatmul.mubr.bf16.gmra.mxu0 %v444
    %v510 = vpop.f32.mrf.mxu0
    %v511 = vadd.f32 %v406, %v510
    %v512 = vpop.f32.mrf.mxu0
    %v513 = vadd.f32 %v406, %v512
    %v514 = vpop.f32.mrf.mxu0
    %v515 = vadd.f32 %v411, %v514
    %v516 = vpop.f32.mrf.mxu0
    %v517 = vadd.f32 %v411, %v516
    %518 = vdwg.mxu0
    %v519 = vtanh.pop %v481
    %v520 = vtanh.pop %v483
    %v521 = vtanh.pop %v485
    %v522 = vtanh.pop %v487
    %v523 = vtanh.pop %v491
    %v524 = vtanh.pop %v493
    %v525 = vtanh.pop %v495
    %v526 = vtanh.pop %v497
    %v527 = vtanh.pop %v501
    %v528 = vtanh.pop %v503
    %v529 = vtanh.pop %v505
    %v530 = vtanh.pop %v507
    %v531 = vtanh.pop %v511
    %v532 = vtanh.pop %v513
    %v533 = vtanh.pop %v515
    %v534 = vtanh.pop %v517
    %v535 = vpack.c.bf16 %v521, %v519
    %v536 = vpack.c.bf16 %v522, %v520
    %v537 = vpack.c.bf16 %v525, %v523
    %v538 = vpack.c.bf16 %v526, %v524
    %v539 = vpack.c.bf16 %v529, %v527
    %v540 = vpack.c.bf16 %v530, %v528
    %v541 = vpack.c.bf16 %v533, %v531
    %v542 = vpack.c.bf16 %v534, %v532
    %v551 = vunpack.c.l.b16 %v33
    %v552 = vunpack.c.l.b16 %v34
    %v553 = vunpack.c.l.b16 %v35
    %v554 = vunpack.c.l.b16 %v36
    %v555 = vunpack.c.l.b16 %v37
    %v556 = vunpack.c.l.b16 %v38
    %v557 = vunpack.c.l.b16 %v39
    %v558 = vunpack.c.l.b16 %v40
    %v559 = vpack.c.b16 %v552, %v551
    %v560 = vpack.c.b16 %v554, %v553
    %v561 = vpack.c.b16 %v556, %v555
    %v562 = vpack.c.b16 %v558, %v557
    %v564 = vsel %vm433, %v559, 0
    %v567 = vsel %vm433, %v560, 0
    %v570 = vsel %vm433, %v561, 0
    %v573 = vsel %vm433, %v562, 0
    %575 = vmatprep.subr.bf16.mxu0 0
    %576 = vmatpush1.bf16.msra.mxu0 0
    %577 = vmatprep.subr.bf16.mxu0 0
    %578 = vmatpush1.bf16.msra.mxu0 0
    %579 = vmatprep.subr.bf16.mxu0 0
    %580 = vmatpush1.bf16.msra.mxu0 0
    %581 = vmatprep.subr.bf16.mxu0 0
    %582 = vmatpush1.bf16.msra.mxu0 0
    %583 = vmatprep.subr.bf16.mxu0 %v542
    %584 = vmatpush1.bf16.msra.mxu0 %v541
    %585 = vmatprep.subr.bf16.mxu0 %v540
    %586 = vmatpush1.bf16.msra.mxu0 %v539
    %587 = vmatprep.subr.bf16.mxu0 %v538
    %588 = vmatpush1.bf16.msra.mxu0 %v537
    %589 = vmatprep.subr.bf16.mxu0 %v536
    %590 = vmatpush1.bf16.msra.mxu0 %v535
    %591 = vmatprep.subr.bf16.mxu0 0
    %592 = vmatpush2.bf16.msra.mxu0 0
    %593 = vmatprep.subr.bf16.mxu0 0
    %594 = vmatpush2.bf16.msra.mxu0 0
    %595 = vmatprep.subr.bf16.mxu0 0
    %596 = vmatpush2.bf16.msra.mxu0 0
    %597 = vmatprep.subr.bf16.mxu0 0
    %598 = vmatpush2.bf16.msra.mxu0 0
    %599 = vmatprep.subr.bf16.mxu0 0
    %600 = vmatpush2.bf16.msra.mxu0 0
    %601 = vmatprep.subr.bf16.mxu0 0
    %602 = vmatpush2.bf16.msra.mxu0 0
    %603 = vmatprep.subr.bf16.mxu0 0
    %604 = vmatpush2.bf16.msra.mxu0 0
    %605 = vmatprep.subr.bf16.mxu0 0
    %606 = vmatpush2.bf16.msra.mxu0 0
    %607 = vmatprep.mubr.bf16.mxu0 0
    %608 = vmatmul.mubr.bf16.gmra.mxu0 %v564
    %v609 = vpop.f32.mrf.mxu0
    %v610 = vadd.f32 %v271, %v609
    %v611 = vpop.f32.mrf.mxu0
    %v612 = vadd.f32 %v273, %v611
    %v613 = vpop.f32.mrf.mxu0
    %v614 = vadd.f32 %v275, %v613
    %v615 = vpop.f32.mrf.mxu0
    %v616 = vadd.f32 %v277, %v615
    %617 = vmatprep.mubr.bf16.mxu0 0
    %618 = vmatmul.mubr.bf16.gmra.mxu0 %v567
    %v619 = vpop.f32.mrf.mxu0
    %v620 = vadd.f32 %v281, %v619
    %v621 = vpop.f32.mrf.mxu0
    %v622 = vadd.f32 %v283, %v621
    %v623 = vpop.f32.mrf.mxu0
    %v624 = vadd.f32 %v285, %v623
    %v625 = vpop.f32.mrf.mxu0
    %v626 = vadd.f32 %v287, %v625
    %627 = vmatprep.mubr.bf16.mxu0 0
    %628 = vmatmul.mubr.bf16.gmra.mxu0 %v570
    %v629 = vpop.f32.mrf.mxu0
    %v630 = vadd.f32 %v291, %v629
    %v631 = vpop.f32.mrf.mxu0
    %v632 = vadd.f32 %v293, %v631
    %v633 = vpop.f32.mrf.mxu0
    %v634 = vadd.f32 %v295, %v633
    %v635 = vpop.f32.mrf.mxu0
    %v636 = vadd.f32 %v297, %v635
    %637 = vmatprep.mubr.bf16.mxu0 0
    %638 = vmatmul.mubr.bf16.gmra.mxu0 %v573
    %v639 = vpop.f32.mrf.mxu0
    %v640 = vadd.f32 %v301, %v639
    %v641 = vpop.f32.mrf.mxu0
    %v642 = vadd.f32 %v303, %v641
    %v643 = vpop.f32.mrf.mxu0
    %v644 = vadd.f32 %v305, %v643
    %v645 = vpop.f32.mrf.mxu0
    %v646 = vadd.f32 %v307, %v645
    %647 = vdwg.mxu0
    %v648 = vtanh.pop %v610
    %v649 = vtanh.pop %v612
    %v650 = vtanh.pop %v614
    %v651 = vtanh.pop %v616
    %v652 = vtanh.pop %v620
    %v653 = vtanh.pop %v622
    %v654 = vtanh.pop %v624
    %v655 = vtanh.pop %v626
    %v656 = vtanh.pop %v630
    %v657 = vtanh.pop %v632
    %v658 = vtanh.pop %v634
    %v659 = vtanh.pop %v636
    %v660 = vtanh.pop %v640
    %v661 = vtanh.pop %v642
    %v662 = vtanh.pop %v644
    %v663 = vtanh.pop %v646
    %v664 = vpack.c.bf16 %v650, %v648
    %v665 = vpack.c.bf16 %v651, %v649
    %v666 = vpack.c.bf16 %v654, %v652
    %v667 = vpack.c.bf16 %v655, %v653
    %v668 = vpack.c.bf16 %v658, %v656
    %v669 = vpack.c.bf16 %v659, %v657
    %v670 = vpack.c.bf16 %v662, %v660
    %v671 = vpack.c.bf16 %v663, %v661
    %672 = vset.pattern.permute.xlu0 1
    %673 = vperm.xlu0 %672, %v57
    %v674 = vpop.permute.xlu0 %673
    %676 = vset.pattern.permute.xlu0 1
    %677 = vperm.xlu0 %676, %v58
    %v678 = vpop.permute.xlu0 %677
    %680 = vset.pattern.permute.xlu0 1
    %681 = vperm.xlu0 %680, %v59
    %v682 = vpop.permute.xlu0 %681
    %684 = vset.pattern.permute.xlu0 1
    %685 = vperm.xlu0 %684, %v60
    %v686 = vpop.permute.xlu0 %685
    %688 = vset.pattern.permute.xlu0 1
    %689 = vperm.xlu0 %688, %v61
    %v690 = vpop.permute.xlu0 %689
    %692 = vset.pattern.permute.xlu0 1
    %693 = vperm.xlu0 %692, %v62
    %v694 = vpop.permute.xlu0 %693
    %696 = vset.pattern.permute.xlu0 1
    %697 = vperm.xlu0 %696, %v63
    %v698 = vpop.permute.xlu0 %697
    %700 = vset.pattern.permute.xlu0 1
    %701 = vperm.xlu0 %700, %v64
    %v702 = vpop.permute.xlu0 %701
    %v712 = vunpack.c.l.b16 %v41
    %v713 = vunpack.c.l.b16 %v42
    %v714 = vunpack.c.l.b16 %v43
    %v715 = vunpack.c.l.b16 %v44
    %v716 = vunpack.c.l.b16 %v45
    %v717 = vunpack.c.l.b16 %v46
    %v718 = vunpack.c.l.b16 %v47
    %v719 = vunpack.c.l.b16 %v48
    %v720 = vpack.c.b16 %v713, %v712
    %v721 = vpack.c.b16 %v715, %v714
    %v722 = vpack.c.b16 %v717, %v716
    %v723 = vpack.c.b16 %v719, %v718
    %v725 = vsel %vm433, %v720, 0
    %v728 = vsel %vm433, %v721, 0
    %v731 = vsel %vm433, %v722, 0
    %v734 = vsel %vm433, %v723, 0
    %736 = vmatprep.subr.bf16.mxu0 0
    %737 = vmatpush1.bf16.msra.mxu0 0
    %738 = vmatprep.subr.bf16.mxu0 0
    %739 = vmatpush1.bf16.msra.mxu0 0
    %740 = vmatprep.subr.bf16.mxu0 0
    %741 = vmatpush1.bf16.msra.mxu0 0
    %742 = vmatprep.subr.bf16.mxu0 0
    %743 = vmatpush1.bf16.msra.mxu0 0
    %744 = vmatprep.subr.bf16.mxu0 %v671
    %745 = vmatpush1.bf16.msra.mxu0 %v670
    %746 = vmatprep.subr.bf16.mxu0 %v669
    %747 = vmatpush1.bf16.msra.mxu0 %v668
    %748 = vmatprep.subr.bf16.mxu0 %v667
    %749 = vmatpush1.bf16.msra.mxu0 %v666
    %750 = vmatprep.subr.bf16.mxu0 %v665
    %751 = vmatpush1.bf16.msra.mxu0 %v664
    %752 = vmatprep.subr.bf16.mxu0 0
    %753 = vmatpush2.bf16.msra.mxu0 0
    %754 = vmatprep.subr.bf16.mxu0 0
    %755 = vmatpush2.bf16.msra.mxu0 0
    %756 = vmatprep.subr.bf16.mxu0 0
    %757 = vmatpush2.bf16.msra.mxu0 0
    %758 = vmatprep.subr.bf16.mxu0 0
    %759 = vmatpush2.bf16.msra.mxu0 0
    %760 = vmatprep.subr.bf16.mxu0 0
    %761 = vmatpush2.bf16.msra.mxu0 0
    %762 = vmatprep.subr.bf16.mxu0 0
    %763 = vmatpush2.bf16.msra.mxu0 0
    %764 = vmatprep.subr.bf16.mxu0 0
    %765 = vmatpush2.bf16.msra.mxu0 0
    %766 = vmatprep.subr.bf16.mxu0 0
    %767 = vmatpush2.bf16.msra.mxu0 0
    %768 = vmatprep.mubr.bf16.mxu0 0
    %769 = vmatmul.mubr.bf16.gmra.mxu0 %v725
    %v770 = vpop.f32.mrf.mxu0
    %v771 = vadd.f32 %v674, %v770
    %v772 = vpop.f32.mrf.mxu0
    %v773 = vadd.f32 %v674, %v772
    %v774 = vpop.f32.mrf.mxu0
    %v775 = vadd.f32 %v678, %v774
    %v776 = vpop.f32.mrf.mxu0
    %v777 = vadd.f32 %v678, %v776
    %778 = vmatprep.mubr.bf16.mxu0 0
    %779 = vmatmul.mubr.bf16.gmra.mxu0 %v728
    %v780 = vpop.f32.mrf.mxu0
    %v781 = vadd.f32 %v682, %v780
    %v782 = vpop.f32.mrf.mxu0
    %v783 = vadd.f32 %v682, %v782
    %v784 = vpop.f32.mrf.mxu0
    %v785 = vadd.f32 %v686, %v784
    %v786 = vpop.f32.mrf.mxu0
    %v787 = vadd.f32 %v686, %v786
    %788 = vmatprep.mubr.bf16.mxu0 0
    %789 = vmatmul.mubr.bf16.gmra.mxu0 %v731
    %v790 = vpop.f32.mrf.mxu0
    %v791 = vadd.f32 %v690, %v790
    %v792 = vpop.f32.mrf.mxu0
    %v793 = vadd.f32 %v690, %v792
    %v794 = vpop.f32.mrf.mxu0
    %v795 = vadd.f32 %v694, %v794
    %v796 = vpop.f32.mrf.mxu0
    %v797 = vadd.f32 %v694, %v796
    %798 = vmatprep.mubr.bf16.mxu0 0
    %799 = vmatmul.mubr.bf16.gmra.mxu0 %v734
    %v800 = vpop.f32.mrf.mxu0
    %v801 = vadd.f32 %v698, %v800
    %v802 = vpop.f32.mrf.mxu0
    %v803 = vadd.f32 %v698, %v802
    %v804 = vpop.f32.mrf.mxu0
    %v805 = vadd.f32 %v702, %v804
    %v806 = vpop.f32.mrf.mxu0
    %v807 = vadd.f32 %v702, %v806
    %808 = vdwg.mxu0
    %v809 = vtanh.pop %v771
    %v810 = vtanh.pop %v773
    %v811 = vtanh.pop %v775
    %v812 = vtanh.pop %v777
    %v813 = vtanh.pop %v781
    %v814 = vtanh.pop %v783
    %v815 = vtanh.pop %v785
    %v816 = vtanh.pop %v787
    %v817 = vtanh.pop %v791
    %v818 = vtanh.pop %v793
    %v819 = vtanh.pop %v795
    %v820 = vtanh.pop %v797
    %v821 = vtanh.pop %v801
    %v822 = vtanh.pop %v803
    %v823 = vtanh.pop %v805
    %v824 = vtanh.pop %v807
    %v825 = vpack.c.bf16 %v811, %v809
    %v826 = vpack.c.bf16 %v812, %v810
    %v827 = vpack.c.bf16 %v815, %v813
    %v828 = vpack.c.bf16 %v816, %v814
    %v829 = vpack.c.bf16 %v819, %v817
    %v830 = vpack.c.bf16 %v820, %v818
    %v831 = vpack.c.bf16 %v823, %v821
    %v832 = vpack.c.bf16 %v824, %v822
    %v841 = vunpack.c.l.b16 %v49
    %v842 = vunpack.c.l.b16 %v50
    %v843 = vunpack.c.l.b16 %v51
    %v844 = vunpack.c.l.b16 %v52
    %v845 = vunpack.c.l.b16 %v53
    %v846 = vunpack.c.l.b16 %v54
    %v847 = vunpack.c.l.b16 %v55
    %v848 = vunpack.c.l.b16 %v56
    %v849 = vpack.c.b16 %v842, %v841
    %v850 = vpack.c.b16 %v844, %v843
    %v851 = vpack.c.b16 %v846, %v845
    %v852 = vpack.c.b16 %v848, %v847
    %v854 = vsel %vm433, %v849, 0
    %v857 = vsel %vm433, %v850, 0
    %v860 = vsel %vm433, %v851, 0
    %v863 = vsel %vm433, %v852, 0
    %865 = vmatprep.subr.bf16.mxu0 0
    %866 = vmatpush1.bf16.msra.mxu0 0
    %867 = vmatprep.subr.bf16.mxu0 0
    %868 = vmatpush1.bf16.msra.mxu0 0
    %869 = vmatprep.subr.bf16.mxu0 0
    %870 = vmatpush1.bf16.msra.mxu0 0
    %871 = vmatprep.subr.bf16.mxu0 0
    %872 = vmatpush1.bf16.msra.mxu0 0
    %873 = vmatprep.subr.bf16.mxu0 %v832
    %874 = vmatpush1.bf16.msra.mxu0 %v831
    %875 = vmatprep.subr.bf16.mxu0 %v830
    %876 = vmatpush1.bf16.msra.mxu0 %v829
    %877 = vmatprep.subr.bf16.mxu0 %v828
    %878 = vmatpush1.bf16.msra.mxu0 %v827
    %879 = vmatprep.subr.bf16.mxu0 %v826
    %880 = vmatpush1.bf16.msra.mxu0 %v825
    %881 = vmatprep.subr.bf16.mxu0 0
    %882 = vmatpush2.bf16.msra.mxu0 0
    %883 = vmatprep.subr.bf16.mxu0 0
    %884 = vmatpush2.bf16.msra.mxu0 0
    %885 = vmatprep.subr.bf16.mxu0 0
    %886 = vmatpush2.bf16.msra.mxu0 0
    %887 = vmatprep.subr.bf16.mxu0 0
    %888 = vmatpush2.bf16.msra.mxu0 0
    %889 = vmatprep.subr.bf16.mxu0 0
    %890 = vmatpush2.bf16.msra.mxu0 0
    %891 = vmatprep.subr.bf16.mxu0 0
    %892 = vmatpush2.bf16.msra.mxu0 0
    %893 = vmatprep.subr.bf16.mxu0 0
    %894 = vmatpush2.bf16.msra.mxu0 0
    %895 = vmatprep.subr.bf16.mxu0 0
    %896 = vmatpush2.bf16.msra.mxu0 0
    %897 = vmatprep.mubr.bf16.mxu0 0
    %898 = vmatmul.mubr.bf16.gmra.mxu0 %v854
    %v899 = vpop.f32.mrf.mxu0
    %v900 = vadd.f32 %v311, %v899
    %v901 = vpop.f32.mrf.mxu0
    %v902 = vadd.f32 %v313, %v901
    %v903 = vpop.f32.mrf.mxu0
    %v904 = vadd.f32 %v315, %v903
    %v905 = vpop.f32.mrf.mxu0
    %v906 = vadd.f32 %v317, %v905
    %907 = vmatprep.mubr.bf16.mxu0 0
    %908 = vmatmul.mubr.bf16.gmra.mxu0 %v857
    %v909 = vpop.f32.mrf.mxu0
    %v910 = vadd.f32 %v321, %v909
    %v911 = vpop.f32.mrf.mxu0
    %v912 = vadd.f32 %v323, %v911
    %v913 = vpop.f32.mrf.mxu0
    %v914 = vadd.f32 %v325, %v913
    %v915 = vpop.f32.mrf.mxu0
    %v916 = vadd.f32 %v327, %v915
    %917 = vmatprep.mubr.bf16.mxu0 0
    %918 = vmatmul.mubr.bf16.gmra.mxu0 %v860
    %v919 = vpop.f32.mrf.mxu0
    %v920 = vadd.f32 %v331, %v919
    %v921 = vpop.f32.mrf.mxu0
    %v922 = vadd.f32 %v333, %v921
    %v923 = vpop.f32.mrf.mxu0
    %v924 = vadd.f32 %v335, %v923
    %v925 = vpop.f32.mrf.mxu0
    %v926 = vadd.f32 %v337, %v925
    %927 = vmatprep.mubr.bf16.mxu0 0
    %928 = vmatmul.mubr.bf16.gmra.mxu0 %v863
    %v929 = vpop.f32.mrf.mxu0
    %v930 = vadd.f32 %v341, %v929
    %v931 = vpop.f32.mrf.mxu0
    %v932 = vadd.f32 %v343, %v931
    %v933 = vpop.f32.mrf.mxu0
    %v934 = vadd.f32 %v345, %v933
    %v935 = vpop.f32.mrf.mxu0
    %v936 = vadd.f32 %v347, %v935
    %937 = vdwg.mxu0
    %v938 = vtanh.pop %v900
    %v939 = vtanh.pop %v902
    %v940 = vtanh.pop %v904
    %v941 = vtanh.pop %v906
    %v942 = vtanh.pop %v910
    %v943 = vtanh.pop %v912
    %v944 = vtanh.pop %v914
    %v945 = vtanh.pop %v916
    %v946 = vtanh.pop %v920
    %v947 = vtanh.pop %v922
    %v948 = vtanh.pop %v924
    %v949 = vtanh.pop %v926
    %v950 = vtanh.pop %v930
    %v951 = vtanh.pop %v932
    %v952 = vtanh.pop %v934
    %v953 = vtanh.pop %v936
    %954 = vset.pattern.permute.xlu0 2
    %955 = vperm.xlu0 %954, %v57
    %v956 = vpop.permute.xlu0 %955
    %958 = vset.pattern.permute.xlu0 2
    %959 = vperm.xlu0 %958, %v58
    %v960 = vpop.permute.xlu0 %959
    %962 = vset.pattern.permute.xlu0 2
    %963 = vperm.xlu0 %962, %v59
    %v964 = vpop.permute.xlu0 %963
    %966 = vset.pattern.permute.xlu0 2
    %967 = vperm.xlu0 %966, %v60
    %v968 = vpop.permute.xlu0 %967
    %970 = vset.pattern.permute.xlu0 2
    %971 = vperm.xlu0 %970, %v61
    %v972 = vpop.permute.xlu0 %971
    %974 = vset.pattern.permute.xlu0 2
    %975 = vperm.xlu0 %974, %v62
    %v976 = vpop.permute.xlu0 %975
    %978 = vset.pattern.permute.xlu0 2
    %979 = vperm.xlu0 %978, %v63
    %v980 = vpop.permute.xlu0 %979
    %982 = vset.pattern.permute.xlu0 2
    %983 = vperm.xlu0 %982, %v64
    %v984 = vpop.permute.xlu0 %983
    %v986 = vmul.f32 %v938, %v956
    %v987 = vmul.f32 %v939, %v956
    %v988 = vmul.f32 %v940, %v960
    %v989 = vmul.f32 %v941, %v960
    %v990 = vmul.f32 %v942, %v964
    %v991 = vmul.f32 %v943, %v964
    %v992 = vmul.f32 %v944, %v968
    %v993 = vmul.f32 %v945, %v968
    %v994 = vmul.f32 %v946, %v972
    %v995 = vmul.f32 %v947, %v972
    %v996 = vmul.f32 %v948, %v976
    %v997 = vmul.f32 %v949, %v976
    %v998 = vmul.f32 %v950, %v980
    %v999 = vmul.f32 %v951, %v980
    %v1000 = vmul.f32 %v952, %v984
    %v1001 = vmul.f32 %v953, %v984
    %v1002 = vadd.f32 %v986, %v988
    %v1003 = vadd.f32 %v1002, %v990
    %v1004 = vadd.f32 %v1003, %v992
    %v1005 = vadd.f32 %v1004, %v994
    %v1006 = vadd.f32 %v1005, %v996
    %v1007 = vadd.f32 %v1006, %v998
    %v1008 = vadd.f32 %v1007, %v1000
    %v1009 = vrot.slane %v1008, 4
    %v1010 = vadd.f32 %v1008, %v1009
    %v1011 = vrot.slane %v1010, 2
    %v1012 = vadd.f32 %v1010, %v1011
    %v1013 = vrot.slane %v1012, 1
    %v1014 = vadd.f32 %v1012, %v1013
    %v1015 = vadd.f32 %v987, %v989
    %v1016 = vadd.f32 %v1015, %v991
    %v1017 = vadd.f32 %v1016, %v993
    %v1018 = vadd.f32 %v1017, %v995
    %v1019 = vadd.f32 %v1018, %v997
    %v1020 = vadd.f32 %v1019, %v999
    %v1021 = vadd.f32 %v1020, %v1001
    %v1022 = vrot.slane %v1021, 4
    %v1023 = vadd.f32 %v1021, %v1022
    %v1024 = vrot.slane %v1023, 2
    %v1025 = vadd.f32 %v1023, %v1024
    %v1026 = vrot.slane %v1025, 1
    %v1027 = vadd.f32 %v1025, %v1026
    %1028 = vset.pattern.permute.xlu0 3
    %1029 = vperm.xlu0 %1028, %v57
    %v1030 = vpop.permute.xlu0 %1029
    %v1032 = vadd.f32 %v1014, %v1030
    %v1033 = vadd.f32 %v1027, %v1030
    %v1036 = vcombine.low %v1032, %v1033
    %v1038 = vunpack.c.l.s4 1966171168
    %v1039 = vunpack.c.0.s8 %v1038
    %v1040 = vlaneseq
    %v1041 = vshrl.u32 %v1040, 7
    %v1042 = vsub.s32 %v1039, %v1041
    %v1043 = vrot.slane %v1036, %v1042
    %v1045 = vunpack.c.l.s4 1966171168
    %v1046 = vunpack.c.0.s8 %v1045
    %v1047 = vlaneseq
    %v1048 = vshrl.u32 %v1047, 7
    %v1049 = vsub.s32 %v1046, %v1048
    %v1050 = vrot.slane %v1043, %v1049
    %v1052 = vlaneseq
    %vm1053 = vcmp.ge.s32.totalorder %v1052, 0
    %vm1054 = vcmp.lt.s32.totalorder %v1052, 256
    %vm1055 = vmand %vm1053, %vm1054
    %1056 = vst.msk [vmem:[#allocation2] sm:$0x3] %vm1055, %v1050
    // Predicated region
    $region18: #{_forward_impl.1} parent=1 // pred_check
      _
    $region19: #{_forward_impl.1} parent=1 // pred_check_branch
      %1058 = sbr.rel (0) target = $region21
    $region20: #{_forward_impl.1} parent=1 // pred_region
      %s1060 = ssub.s32 32, 32
      %1061 = vsyncadd [#allocation3], %s1060
      %s1063 = sshll.u32 [#allocation2], 4
      %s1064 = int_to_ptr.vmem [resolvable:$true] %s1063
      %1066 = dma.vmem_to_hbm [thread:$0]  %s1064, 32, %s4, [#allocation3]
    $region21: #{_forward_impl.1} parent=1 // pred_fallthru
      _
    // Predicated region
    $region22: #{_forward_impl.1} parent=1 // pred_check
      _
    $region23: #{_forward_impl.1} parent=1 // pred_check_branch
      %1068 = sbr.rel (0) target = $region25
    $region24: #{_forward_impl.1} parent=1 // pred_region
      %1069 = dma.done [#allocation3], 32
    $region25: #{_forward_impl.1} parent=1 // pred_fallthru
      _
    %1070 = vsyncpa [#allocation3], 1

</llo_original>
